<compile_context>
chip_gen: v7x
topology: tpu7x:2x2x1
jax: 0.10.0
libtpu: 0.0.40
codegen_flags: <defaults>
</compile_context>

<pallas_src>
import functools

import jax
import jax.numpy as jnp
from jax.experimental import pallas as pl
from jax.experimental.pallas import tpu as pltpu


def _round_up(v, m):
    return ((v + m - 1) // m) * m


# ---------------------------------------------------------------------------
# Fused kernel: `nb` images per grid step, unified lane layout.
#   x_ref    : (1, 4*Cin, Wsrc)   LeakyReLU-input phase planes, lane = (S+1)+m*IMG+r*S+c
#   w1_ref   : (inner, 16*Cin)    encoder conv weight, columns = (tap-group t=2a+b, phase, ci)
#   w2_ref   : (4*Cout, 9*inner)  fused decoder weight (BN scale folded), rows = (phase, co),
#                                 cols = (shift t=3a+b, ci)
#   b2_ref   : (4*Cout, 1)        BN bias per (phase, co)
#   mask_ref : (1, Lmat)          1.0 on valid e positions, 0.0 on padding/halo/round-up lanes
#   o_ref    : (1, 4*Cout, Lmat)  decoder output, same lane layout, all 4 phases stacked on rows
#   cols1_ref: VMEM (16*Cin, Lmat)      encoder im2col scratch (4 tap-groups x 16 rows)
#   ep_ref   : VMEM (inner, Lmat+2*M)   ReLU(e) with 128-lane zero margins for decoder shifts
#   cols2_ref: VMEM (9*inner, Lmat)     decoder im2col scratch (9 shifts x 8 rows)
# ---------------------------------------------------------------------------
def _uskip_center_kernel(x_ref, w1_ref, w2_ref, b2_ref, mask_ref, o_ref,
                         cols1_ref, ep_ref, cols2_ref, *, S, Lmat, M, slope):
    C4 = x_ref.shape[1]            # 4 * Cin  (phase-major source rows)
    inner = w1_ref.shape[0]

    # LeakyReLU once per element on the whole phase-split source tile.
    xv = x_ref[0]
    xv = jnp.where(xv >= 0, xv, slope * xv)

    # Encoder im2col: 4 tap-groups, each a FULL-HEIGHT (16-row, 8-aligned) contiguous
    # lane slice of the source -> no sublane shuffles, aligned stores.
    for a in range(2):
        for b in range(2):
            t = 2 * a + b
            start = a * S + b
            cols1_ref[t * C4:(t + 1) * C4, :] = xv[:, start:start + Lmat]

    # Encoder matmul, ReLU, and zero all decoder-halo positions via the lane mask.
    e = jnp.dot(w1_ref[...], cols1_ref[...], preferred_element_type=jnp.float32)
    e = jnp.maximum(e, 0.0) * mask_ref[...]

    # Padded-e buffer: 128-lane aligned zero margins so the 9 decoder shifts never go OOB.
    ep_ref[:, :M] = jnp.zeros((inner, M), jnp.float32)
    ep_ref[:, M + Lmat:] = jnp.zeros((inner, M), jnp.float32)
    ep_ref[:, M:M + Lmat] = e                       # one aligned bulk store

    # Decoder im2col: 9 distinct (a,b) shifts (8-row aligned stores), then ONE fused
    # matmul producing all 4 output phases -> one unmasked lane-dense store.
    for a in range(3):
        for b in range(3):
            t = 3 * a + b
            off = (a - 1) * S + (b - 1)
            cols2_ref[t * inner:(t + 1) * inner, :] = ep_ref[:, M + off:M + off + Lmat]

    r = jnp.dot(w2_ref[...], cols2_ref[...], preferred_element_type=jnp.float32)
    r = r + b2_ref[...]                             # BN bias, added once
    o_ref[0] = r.astype(o_ref.dtype)


# ---------------------------------------------------------------------------
# Wrapper: cheap O(x)/O(out) layout plumbing + one fused pallas_call.
# ---------------------------------------------------------------------------
def uskipblock_center_forward(x, params):
    N, Cin, H, W = x.shape
    assert H % 2 == 0 and W % 2 == 0, "uSkipBlock center requires even spatial dims"
    inner = params["e_conv_w"].shape[0]
    Cout = params["d_conv_w"].shape[1]
    Ho, Wo = H // 2, W // 2
    S = Wo + 2                         # padded-e row stride (cols 0..Wo+1)
    IMG = (Ho + 2) * S                 # per-image lane block (padded-e rows 0..Ho+1)
    M = _round_up(S + 1, 128)          # decoder-shift margin, 128-aligned
    f32 = jnp.float32

    # Images per grid step: target ~512 lanes/step, but keep >=2 steps when N>=2 (v7x: 2 TCs).
    nb = max(1, min(N, 512 // IMG))
    if N >= 2 and (N + nb - 1) // nb < 2:
        nb = max(1, (N + 1) // 2)
    G = (N + nb - 1) // nb
    Np = G * nb
    Lmat = _round_up(nb * IMG, 128)    # matmul N-dim / output lane width (128-multiple)
    Wsrc = S + 1 + Lmat                # source width (S+1 left margin for encoder taps)

    # ---- phase-split source, unified lane layout: lane = (S+1) + m*IMG + r*S + c ----
    xp = jnp.pad(x.astype(f32), ((0, 0), (0, 0), (1, 1), (1, 1)))
    ph = xp.reshape(N, Cin, Ho + 1, 2, Wo + 1, 2).transpose(0, 3, 5, 1, 2, 4)
    ph = ph.reshape(N, 4 * Cin, Ho + 1, Wo + 1)
    ph = jnp.pad(ph, ((0, 0), (0, 0), (0, 1), (0, S - (Wo + 1))))     # (N, 4Cin, Ho+2, S)
    flat = ph.reshape(N, 4 * Cin, IMG)
    flat = jnp.pad(flat, ((0, Np - N), (0, 0), (0, 0)))
    flat = flat.reshape(G, nb, 4 * Cin, IMG).transpose(0, 2, 1, 3).reshape(G, 4 * Cin, nb * IMG)
    xsrc = jnp.pad(flat, ((0, 0), (0, 0), (S + 1, Wsrc - (S + 1) - nb * IMG)))

    # ---- encoder weight: columns ordered (tap-group t=2a+b, phase ph=2py+px, ci) ----
    we = params["e_conv_w"].astype(f32)                               # (inner, Cin, 4, 4)
    w1 = we.reshape(inner, Cin, 2, 2, 2, 2).transpose(0, 2, 4, 3, 5, 1).reshape(inner, 16 * Cin)

    # ---- BatchNorm (eval) folded: scale into decoder weight, bias added in kernel ----
    inv_std = jax.lax.rsqrt(params["bn_var"].astype(f32) + 1e-5)
    scale = params["bn_gamma"].astype(f32) * inv_std
    bias = params["bn_beta"].astype(f32) - params["bn_mean"].astype(f32) * scale

    # ---- fused decoder weight (4*Cout, 9*inner): rows = (phase, co), cols = (shift, ci) ----
    wd = params["d_conv_w"].astype(f32)                               # (inner, Cout, 4, 4)
    zero_blk = jnp.zeros((Cout, inner), f32)
    blocks = [[zero_blk for _ in range(9)] for _ in range(4)]
    for py in range(2):
        for px in range(2):
            p = 2 * py + px
            for ky in range((py + 1) % 2, 4, 2):                      # taps hitting this row-phase
                a = (py + 3 - ky) // 2
                for kx in range((px + 1) % 2, 4, 2):
                    b = (px + 3 - kx) // 2
                    blocks[p][3 * a + b] = wd[:, :, ky, kx].T * scale[:, None]
    w2 = jnp.concatenate([jnp.concatenate(row, axis=1) for row in blocks], axis=0)
    b2 = jnp.tile(bias, 4)[:, None]                                   # (4*Cout, 1)

    # ---- validity mask over matmul columns (zeroes padded-e halo + round-up lanes) ----
    jj = jnp.arange(Lmat)
    rr = (jj % IMG) // S
    cc = jj % S
    mask = ((jj < nb * IMG) & (rr >= 1) & (rr <= Ho) & (cc >= 1) & (cc <= Wo)).astype(f32)[None, :]

    kernel = functools.partial(_uskip_center_kernel, S=S, Lmat=Lmat, M=M, slope=0.2)
    out_flat = pl.pallas_call(
        kernel,
        out_shape=jax.ShapeDtypeStruct((G, 4 * Cout, Lmat), f32),
        grid=(G,),
        in_specs=[
            pl.BlockSpec((1, 4 * Cin, Wsrc), lambda g: (g, 0, 0)),
            pl.BlockSpec((inner, 16 * Cin), lambda g: (0, 0)),
            pl.BlockSpec((4 * Cout, 9 * inner), lambda g: (0, 0)),
            pl.BlockSpec((4 * Cout, 1), lambda g: (0, 0)),
            pl.BlockSpec((1, Lmat), lambda g: (0, 0)),
        ],
        out_specs=pl.BlockSpec((1, 4 * Cout, Lmat), lambda g: (g, 0, 0)),
        scratch_shapes=[
            pltpu.VMEM((16 * Cin, Lmat), f32),          # encoder im2col
            pltpu.VMEM((inner, Lmat + 2 * M), f32),     # padded ReLU(e) with aligned margins
            pltpu.VMEM((9 * inner, Lmat), f32),         # decoder im2col (9 shifts)
        ],
        compiler_params=pltpu.CompilerParams(dimension_semantics=("parallel",)),
    )(xsrc, w1, w2, b2, mask)

    # unified-lane layout -> NCHW (drop padding rows/cols and round-up lanes)
    o = out_flat[:, :, :nb * IMG].reshape(G, 2, 2, Cout, nb, Ho + 2, S)
    o = o[:, :, :, :, :, 1:Ho + 1, 1:Wo + 1]            # (G, py, px, Cout, nb, Ho, Wo)
    o = o.transpose(0, 4, 3, 5, 1, 6, 2)                # (G, nb, Cout, Ho, py, Wo, px)
    d = o.reshape(G * nb, Cout, H, W)[:N]
    # Dropout(0.5): identity in eval mode.
    return jnp.concatenate([x, d], axis=1)


# pure-JAX reference (lax convs) for validation
def _reference_forward(x, params):
    lrelu = jnp.where(x >= 0, x, 0.2 * x)
    e = jax.lax.conv_general_dilated(
        lrelu, params["e_conv_w"], (2, 2), [(1, 1), (1, 1)],
        dimension_numbers=("NCHW", "OIHW", "NCHW"))
    r = jnp.maximum(e, 0.0)
    w_eq = jnp.flip(params["d_conv_w"], axis=(2, 3)).transpose(1, 0, 2, 3)
    d = jax.lax.conv_general_dilated(
        r, w_eq, (1, 1), [(2, 2), (2, 2)], lhs_dilation=(2, 2),
        dimension_numbers=("NCHW", "OIHW", "NCHW"))
    inv_std = 1.0 / jnp.sqrt(params["bn_var"] + 1e-5)
    d = (d - params["bn_mean"][None, :, None, None]) * inv_std[None, :, None, None]
    d = d * params["bn_gamma"][None, :, None, None] + params["bn_beta"][None, :, None, None]
    return jnp.concatenate([x, d], axis=1)


if __name__ == "__main__":
    input_nc, inner_nc, output_nc = 4, 8, 4
    N, H, W = 2, 16, 16

    key = jax.random.PRNGKey(0)
    kx, k1, k2, k3, k4 = jax.random.split(key, 5)

    x = jax.random.normal(kx, (N, input_nc, H, W), jnp.float32)

    params = {
        # Conv2d(input_nc, inner_nc, k=4, s=2, p=1, bias=False): (Cout, Cin, 4, 4)
        "e_conv_w": 0.1 * jax.random.normal(k1, (inner_nc, input_nc, 4, 4), jnp.float32),
        # ConvTranspose2d(inner_nc, output_nc, k=4, s=2, p=1, bias=False): (Cin, Cout, 4, 4)
        "d_conv_w": 0.1 * jax.random.normal(k2, (inner_nc, output_nc, 4, 4), jnp.float32),
        # BatchNorm2d(output_nc) — deterministic non-trivial eval-mode stats/affine
        "bn_gamma": 1.0 + 0.1 * jax.random.normal(k3, (output_nc,), jnp.float32),
        "bn_beta": 0.1 * jax.random.normal(k4, (output_nc,), jnp.float32),
        "bn_mean": 0.05 * jnp.arange(output_nc, dtype=jnp.float32),
        "bn_var": 1.0 + 0.1 * jnp.arange(output_nc, dtype=jnp.float32),
    }

    out = jax.jit(uskipblock_center_forward)(x, params)
    out = jax.block_until_ready(out)

    ref = _reference_forward(x, params)
    assert out.shape == (N, input_nc + output_nc, H, W), out.shape
    assert jnp.allclose(out, ref, atol=2e-4, rtol=2e-4), float(jnp.max(jnp.abs(out - ref)))

    print("KERNEL_OK")
</pallas_src>

<mosaic_0001>
module attributes {stable_mosaic.version = 11 : i64} {
  func.func @_uskip_center_kernel(%arg0: i32, %arg1: memref<1x16x139xf32, #tpu.memory_space<vmem>>, %arg2: memref<8x64xf32, #tpu.memory_space<vmem>>, %arg3: memref<16x72xf32, #tpu.memory_space<vmem>>, %arg4: memref<16x1xf32, #tpu.memory_space<vmem>>, %arg5: memref<1x128xf32, #tpu.memory_space<vmem>>, %arg6: memref<1x16x128xf32, #tpu.memory_space<vmem>>, %arg7: memref<64x128xf32, #tpu.memory_space<vmem>>, %arg8: memref<8x384xf32, #tpu.memory_space<vmem>>, %arg9: memref<72x128xf32, #tpu.memory_space<vmem>>) attributes {dimension_semantics = [#tpu.dimension_semantics<parallel>], iteration_bounds = array<i64: 2>, scalar_prefetch = 0 : i64, scratch_operands = 3 : i64, tpu.core_type = #tpu.core_type<tc>, window_params = [{transform_indices = @transform_0, window_bounds = array<i64: 1, 16, 139>}, {pipeline_mode = #tpu.pipeline_mode<synchronous>, transform_indices = @transform_1, window_bounds = array<i64: 8, 64>}, {pipeline_mode = #tpu.pipeline_mode<synchronous>, transform_indices = @transform_2, window_bounds = array<i64: 16, 72>}, {pipeline_mode = #tpu.pipeline_mode<synchronous>, transform_indices = @transform_3, window_bounds = array<i64: 16, 1>}, {pipeline_mode = #tpu.pipeline_mode<synchronous>, transform_indices = @transform_4, window_bounds = array<i64: 1, 128>}, {transform_indices = @transform_5, window_bounds = array<i64: 1, 16, 128>}]} {
    %c0 = arith.constant 0 : index
    %c0_0 = arith.constant 0 : index
    %c0_1 = arith.constant 0 : index
    %0 = vector.load %arg1[%c0, %c0_0, %c0_1] : memref<1x16x139xf32, #tpu.memory_space<vmem>>, vector<1x16x139xf32>
    %1 = vector.shape_cast %0 : vector<1x16x139xf32> to vector<16x139xf32>
    %cst = arith.constant 0.000000e+00 : f32
    %2 = vector.broadcast %cst : f32 to vector<16x139xf32>
    %3 = arith.cmpf oge, %1, %2 : vector<16x139xf32>
    %cst_2 = arith.constant 2.000000e-01 : f32
    %4 = vector.broadcast %cst_2 : f32 to vector<16x139xf32>
    %5 = arith.mulf %4, %1 : vector<16x139xf32>
    %6 = arith.select %3, %1, %5 : vector<16x139xi1>, vector<16x139xf32>
    %7 = vector.extract_strided_slice %6 {offsets = [0, 0], sizes = [16, 128], strides = [1, 1]} : vector<16x139xf32> to vector<16x128xf32>
    %c0_3 = arith.constant 0 : index
    %c0_4 = arith.constant 0 : index
    %8 = vector.load %arg7[%c0_3, %c0_4] : memref<64x128xf32, #tpu.memory_space<vmem>>, vector<16x128xf32>
    tpu.vector_store %arg7[%c0_3, %c0_4], %7 {strides = array<i32>} : memref<64x128xf32, #tpu.memory_space<vmem>>, vector<16x128xf32>,
    %9 = vector.extract_strided_slice %6 {offsets = [0, 1], sizes = [16, 128], strides = [1, 1]} : vector<16x139xf32> to vector<16x128xf32>
    %c16 = arith.constant 16 : index
    %c0_5 = arith.constant 0 : index
    %10 = vector.load %arg7[%c16, %c0_5] : memref<64x128xf32, #tpu.memory_space<vmem>>, vector<16x128xf32>
    tpu.vector_store %arg7[%c16, %c0_5], %9 {strides = array<i32>} : memref<64x128xf32, #tpu.memory_space<vmem>>, vector<16x128xf32>,
    %11 = vector.extract_strided_slice %6 {offsets = [0, 10], sizes = [16, 128], strides = [1, 1]} : vector<16x139xf32> to vector<16x128xf32>
    %c32 = arith.constant 32 : index
    %c0_6 = arith.constant 0 : index
    %12 = vector.load %arg7[%c32, %c0_6] : memref<64x128xf32, #tpu.memory_space<vmem>>, vector<16x128xf32>
    tpu.vector_store %arg7[%c32, %c0_6], %11 {strides = array<i32>} : memref<64x128xf32, #tpu.memory_space<vmem>>, vector<16x128xf32>,
    %13 = vector.extract_strided_slice %6 {offsets = [0, 11], sizes = [16, 128], strides = [1, 1]} : vector<16x139xf32> to vector<16x128xf32>
    %c48 = arith.constant 48 : index
    %c0_7 = arith.constant 0 : index
    %14 = vector.load %arg7[%c48, %c0_7] : memref<64x128xf32, #tpu.memory_space<vmem>>, vector<16x128xf32>
    tpu.vector_store %arg7[%c48, %c0_7], %13 {strides = array<i32>} : memref<64x128xf32, #tpu.memory_space<vmem>>, vector<16x128xf32>,
    %c0_8 = arith.constant 0 : index
    %c0_9 = arith.constant 0 : index
    %15 = vector.load %arg2[%c0_8, %c0_9] : memref<8x64xf32, #tpu.memory_space<vmem>>, vector<8x64xf32>
    %c0_10 = arith.constant 0 : index
    %c0_11 = arith.constant 0 : index
    %16 = vector.load %arg7[%c0_10, %c0_11] : memref<64x128xf32, #tpu.memory_space<vmem>>, vector<64x128xf32>
    %cst_12 = arith.constant dense<0.000000e+00> : vector<8x128xf32>
    %17 = tpu.matmul %15, %16, %cst_12 {dimension_numbers = #tpu.dot_dimension_numbers<[1], [0], [0], [1], [0, 0, 1, 1], [], []>} : vector<8x64xf32>, vector<64x128xf32>, vector<8x128xf32> -> vector<8x128xf32>
    %cst_13 = arith.constant 0.000000e+00 : f32
    %18 = vector.broadcast %cst_13 : f32 to vector<8x128xf32>
    %19 = arith.maximumf %17, %18 : vector<8x128xf32>
    %c0_14 = arith.constant 0 : index
    %c0_15 = arith.constant 0 : index
    %20 = vector.load %arg5[%c0_14, %c0_15] : memref<1x128xf32, #tpu.memory_space<vmem>>, vector<1x128xf32>
    %21 = vector.broadcast %20 : vector<1x128xf32> to vector<8x128xf32>
    %22 = arith.mulf %19, %21 : vector<8x128xf32>
    %cst_16 = arith.constant 0.000000e+00 : f32
    %23 = vector.broadcast %cst_16 : f32 to vector<8x128xf32>
    %c0_17 = arith.constant 0 : index
    %c0_18 = arith.constant 0 : index
    %24 = vector.load %arg8[%c0_17, %c0_18] : memref<8x384xf32, #tpu.memory_space<vmem>>, vector<8x128xf32>
    tpu.vector_store %arg8[%c0_17, %c0_18], %23 {strides = array<i32>} : memref<8x384xf32, #tpu.memory_space<vmem>>, vector<8x128xf32>,
    %cst_19 = arith.constant 0.000000e+00 : f32
    %25 = vector.broadcast %cst_19 : f32 to vector<8x128xf32>
    %c0_20 = arith.constant 0 : index
    %c256 = arith.constant 256 : index
    %26 = vector.load %arg8[%c0_20, %c256] : memref<8x384xf32, #tpu.memory_space<vmem>>, vector<8x128xf32>
    tpu.vector_store %arg8[%c0_20, %c256], %25 {strides = array<i32>} : memref<8x384xf32, #tpu.memory_space<vmem>>, vector<8x128xf32>,
    %c0_21 = arith.constant 0 : index
    %c128 = arith.constant 128 : index
    %27 = vector.load %arg8[%c0_21, %c128] : memref<8x384xf32, #tpu.memory_space<vmem>>, vector<8x128xf32>
    tpu.vector_store %arg8[%c0_21, %c128], %22 {strides = array<i32>} : memref<8x384xf32, #tpu.memory_space<vmem>>, vector<8x128xf32>,
    %c0_22 = arith.constant 0 : index
    %c117 = arith.constant 117 : index
    %28 = vector.load %arg8[%c0_22, %c117] : memref<8x384xf32, #tpu.memory_space<vmem>>, vector<8x128xf32>
    %c0_23 = arith.constant 0 : index
    %c0_24 = arith.constant 0 : index
    %29 = vector.load %arg9[%c0_23, %c0_24] : memref<72x128xf32, #tpu.memory_space<vmem>>, vector<8x128xf32>
    tpu.vector_store %arg9[%c0_23, %c0_24], %28 {strides = array<i32>} : memref<72x128xf32, #tpu.memory_space<vmem>>, vector<8x128xf32>,
    %c0_25 = arith.constant 0 : index
    %c118 = arith.constant 118 : index
    %30 = vector.load %arg8[%c0_25, %c118] : memref<8x384xf32, #tpu.memory_space<vmem>>, vector<8x128xf32>
    %c8 = arith.constant 8 : index
    %c0_26 = arith.constant 0 : index
    %31 = vector.load %arg9[%c8, %c0_26] : memref<72x128xf32, #tpu.memory_space<vmem>>, vector<8x128xf32>
    tpu.vector_store %arg9[%c8, %c0_26], %30 {strides = array<i32>} : memref<72x128xf32, #tpu.memory_space<vmem>>, vector<8x128xf32>,
    %c0_27 = arith.constant 0 : index
    %c119 = arith.constant 119 : index
    %32 = vector.load %arg8[%c0_27, %c119] : memref<8x384xf32, #tpu.memory_space<vmem>>, vector<8x128xf32>
    %c16_28 = arith.constant 16 : index
    %c0_29 = arith.constant 0 : index
    %33 = vector.load %arg9[%c16_28, %c0_29] : memref<72x128xf32, #tpu.memory_space<vmem>>, vector<8x128xf32>
    tpu.vector_store %arg9[%c16_28, %c0_29], %32 {strides = array<i32>} : memref<72x128xf32, #tpu.memory_space<vmem>>, vector<8x128xf32>,
    %c0_30 = arith.constant 0 : index
    %c127 = arith.constant 127 : index
    %34 = vector.load %arg8[%c0_30, %c127] : memref<8x384xf32, #tpu.memory_space<vmem>>, vector<8x128xf32>
    %c24 = arith.constant 24 : index
    %c0_31 = arith.constant 0 : index
    %35 = vector.load %arg9[%c24, %c0_31] : memref<72x128xf32, #tpu.memory_space<vmem>>, vector<8x128xf32>
    tpu.vector_store %arg9[%c24, %c0_31], %34 {strides = array<i32>} : memref<72x128xf32, #tpu.memory_space<vmem>>, vector<8x128xf32>,
    %c0_32 = arith.constant 0 : index
    %c128_33 = arith.constant 128 : index
    %36 = vector.load %arg8[%c0_32, %c128_33] : memref<8x384xf32, #tpu.memory_space<vmem>>, vector<8x128xf32>
    %c32_34 = arith.constant 32 : index
    %c0_35 = arith.constant 0 : index
    %37 = vector.load %arg9[%c32_34, %c0_35] : memref<72x128xf32, #tpu.memory_space<vmem>>, vector<8x128xf32>
    tpu.vector_store %arg9[%c32_34, %c0_35], %36 {strides = array<i32>} : memref<72x128xf32, #tpu.memory_space<vmem>>, vector<8x128xf32>,
    %c0_36 = arith.constant 0 : index
    %c129 = arith.constant 129 : index
    %38 = vector.load %arg8[%c0_36, %c129] : memref<8x384xf32, #tpu.memory_space<vmem>>, vector<8x128xf32>
    %c40 = arith.constant 40 : index
    %c0_37 = arith.constant 0 : index
    %39 = vector.load %arg9[%c40, %c0_37] : memref<72x128xf32, #tpu.memory_space<vmem>>, vector<8x128xf32>
    tpu.vector_store %arg9[%c40, %c0_37], %38 {strides = array<i32>} : memref<72x128xf32, #tpu.memory_space<vmem>>, vector<8x128xf32>,
    %c0_38 = arith.constant 0 : index
    %c137 = arith.constant 137 : index
    %40 = vector.load %arg8[%c0_38, %c137] : memref<8x384xf32, #tpu.memory_space<vmem>>, vector<8x128xf32>
    %c48_39 = arith.constant 48 : index
    %c0_40 = arith.constant 0 : index
    %41 = vector.load %arg9[%c48_39, %c0_40] : memref<72x128xf32, #tpu.memory_space<vmem>>, vector<8x128xf32>
    tpu.vector_store %arg9[%c48_39, %c0_40], %40 {strides = array<i32>} : memref<72x128xf32, #tpu.memory_space<vmem>>, vector<8x128xf32>,
    %c0_41 = arith.constant 0 : index
    %c138 = arith.constant 138 : index
    %42 = vector.load %arg8[%c0_41, %c138] : memref<8x384xf32, #tpu.memory_space<vmem>>, vector<8x128xf32>
    %c56 = arith.constant 56 : index
    %c0_42 = arith.constant 0 : index
    %43 = vector.load %arg9[%c56, %c0_42] : memref<72x128xf32, #tpu.memory_space<vmem>>, vector<8x128xf32>
    tpu.vector_store %arg9[%c56, %c0_42], %42 {strides = array<i32>} : memref<72x128xf32, #tpu.memory_space<vmem>>, vector<8x128xf32>,
    %c0_43 = arith.constant 0 : index
    %c139 = arith.constant 139 : index
    %44 = vector.load %arg8[%c0_43, %c139] : memref<8x384xf32, #tpu.memory_space<vmem>>, vector<8x128xf32>
    %c64 = arith.constant 64 : index
    %c0_44 = arith.constant 0 : index
    %45 = vector.load %arg9[%c64, %c0_44] : memref<72x128xf32, #tpu.memory_space<vmem>>, vector<8x128xf32>
    tpu.vector_store %arg9[%c64, %c0_44], %44 {strides = array<i32>} : memref<72x128xf32, #tpu.memory_space<vmem>>, vector<8x128xf32>,
    %c0_45 = arith.constant 0 : index
    %c0_46 = arith.constant 0 : index
    %46 = vector.load %arg3[%c0_45, %c0_46] : memref<16x72xf32, #tpu.memory_space<vmem>>, vector<16x72xf32>
    %c0_47 = arith.constant 0 : index
    %c0_48 = arith.constant 0 : index
    %47 = vector.load %arg9[%c0_47, %c0_48] : memref<72x128xf32, #tpu.memory_space<vmem>>, vector<72x128xf32>
    %cst_49 = arith.constant dense<0.000000e+00> : vector<16x128xf32>
    %48 = tpu.matmul %46, %47, %cst_49 {dimension_numbers = #tpu.dot_dimension_numbers<[1], [0], [0], [1], [0, 0, 1, 1], [], []>} : vector<16x72xf32>, vector<72x128xf32>, vector<16x128xf32> -> vector<16x128xf32>
    %c0_50 = arith.constant 0 : index
    %c0_51 = arith.constant 0 : index
    %49 = vector.load %arg4[%c0_50, %c0_51] : memref<16x1xf32, #tpu.memory_space<vmem>>, vector<16x1xf32>
    %50 = vector.broadcast %49 : vector<16x1xf32> to vector<16x128xf32>
    %51 = arith.addf %48, %50 : vector<16x128xf32>
    %c0_52 = arith.constant 0 : index
    %c0_53 = arith.constant 0 : index
    %c0_54 = arith.constant 0 : index
    %52 = vector.load %arg6[%c0_52, %c0_53, %c0_54] : memref<1x16x128xf32, #tpu.memory_space<vmem>>, vector<1x16x128xf32>
    %53 = vector.shape_cast %52 : vector<1x16x128xf32> to vector<16x128xf32>
    %54 = vector.shape_cast %51 : vector<16x128xf32> to vector<1x16x128xf32>
    tpu.vector_store %arg6[%c0_52, %c0_53, %c0_54], %54 {strides = array<i32>} : memref<1x16x128xf32, #tpu.memory_space<vmem>>, vector<1x16x128xf32>,
    return
  }
  func.func @transform_0(%arg0: i32) -> (i32, i32, i32) {
    %c0_i32 = arith.constant 0 : i32
    %c0_i32_0 = arith.constant 0 : i32
    %c0_i32_1 = arith.constant 0 : i32
    return %arg0, %c0_i32, %c0_i32_0 : i32, i32, i32
  }
  func.func @transform_1(%arg0: i32) -> (i32, i32) {
    %c0_i32 = arith.constant 0 : i32
    %c0_i32_0 = arith.constant 0 : i32
    %c0_i32_1 = arith.constant 0 : i32
    return %c0_i32, %c0_i32_0 : i32, i32
  }
  func.func @transform_2(%arg0: i32) -> (i32, i32) {
    %c0_i32 = arith.constant 0 : i32
    %c0_i32_0 = arith.constant 0 : i32
    %c0_i32_1 = arith.constant 0 : i32
    return %c0_i32, %c0_i32_0 : i32, i32
  }
  func.func @transform_3(%arg0: i32) -> (i32, i32) {
    %c0_i32 = arith.constant 0 : i32
    %c0_i32_0 = arith.constant 0 : i32
    %c0_i32_1 = arith.constant 0 : i32
    return %c0_i32, %c0_i32_0 : i32, i32
  }
  func.func @transform_4(%arg0: i32) -> (i32, i32) {
    %c0_i32 = arith.constant 0 : i32
    %c0_i32_0 = arith.constant 0 : i32
    %c0_i32_1 = arith.constant 0 : i32
    return %c0_i32, %c0_i32_0 : i32, i32
  }
  func.func @transform_5(%arg0: i32) -> (i32, i32, i32) {
    %c0_i32 = arith.constant 0 : i32
    %c0_i32_0 = arith.constant 0 : i32
    %c0_i32_1 = arith.constant 0 : i32
    return %arg0, %c0_i32, %c0_i32_0 : i32, i32, i32
  }
}

</mosaic_0001>

<llo_original>
// kernel: tile.8
$region0: #{tile.8}
  #allocation0 [shape = 's32[1]{0}', space=sflag, size = 0x4, scoped, tag = 'scoped memory for tile.8']
  %s0 = inlined_call_operand.vmem [shape: f32[4], index: 0, kind: input, shape index: {}]
  %s1 = inlined_call_operand.vmem [shape: f32[4,4], index: 1, kind: output, shape index: {}]
  // Predicated region
  $region2: #{tile.8} parent=0 // pred_check
    _
  $region3: #{tile.8} parent=0 // pred_check_branch
    %3 = sbr.rel (0) target = $region5
  $region4: #{tile.8} parent=0 // pred_region
    _
  $region5: #{tile.8} parent=0 // pred_fallthru
    _
  %v4 = vld [vmem:[%s0] ss:$0 sm:$0xff]
  %5 = vst [vmem:[%s1] sm:$0xf] %v4

// kernel: tile.0
$region0: #{tile.0}
  %s0 = inlined_call_operand.vmem [shape: f32[4,4], index: 0, kind: input, shape index: {}]
  %s1 = inlined_call_operand.vmem [shape: f32[16,1], index: 1, kind: output, shape index: {}]
  $region1: #{tile.0} parent=0
    #allocation0 [shape = 'u8[4096]{0}', space=vmem, size = 0x1000, scoped, tag = 'scoped mem for input reshape']
    %s3 = sshllo.u32 0, 4
    %v4 = vld [vmem:[%s0] sm:%s3]
    %5 = vst [vmem:[#allocation0] sm:%s3] %v4
    %v6 = vld [vmem:[#allocation0] sm:$0xf]
    %vm7 = vcmask 7168
    %8 = vst.msk [vmem:[%s1] ss:$4 sm:$0xf] %vm7, %v6
    %v9 = vld [vmem:[#allocation0] sm:$0xf]
    %10 = vrot.lane.b32.xlu0 %v9, 127
    %v11 = vpop.permute.xlu0 %10
    %vm12 = vcmask 7168
    %s13 = scalar_lea.vmem %s1, 1
    %14 = vst.msk [vmem:[%s13] ss:$4 sm:$0xf] %vm12, %v11
    %v15 = vld [vmem:[#allocation0] sm:$0xf]
    %16 = vrot.lane.b32.xlu0 %v15, 126
    %v17 = vpop.permute.xlu0 %16
    %vm18 = vcmask 7168
    %s19 = scalar_lea.vmem %s1, 2
    %20 = vst.msk [vmem:[%s19] ss:$4 sm:$0xf] %vm18, %v17
    %v21 = vld [vmem:[#allocation0] sm:$0xf]
    %22 = vrot.lane.b32.xlu0 %v21, 125
    %v23 = vpop.permute.xlu0 %22
    %vm24 = vcmask 7168
    %s25 = scalar_lea.vmem %s1, 3
    %26 = vst.msk [vmem:[%s25] ss:$4 sm:$0xf] %vm24, %v23

// kernel: uskipblock_center_forward.1
$region0: #{uskipblock_center_forward.1}
  #allocation0 [shape = 'u32[]', space=smem, size = 0x4, offset = 0x4, fixed_abs, tag = 'smem constant byte address 0x4 - core index']
  #allocation1 [shape = 'u32[144,128]{1,0:T(1,128)}', space=vmem, size = 0x12000, scoped, tag = 'internal scratch']
  #allocation2 [shape = 'f32[64,128]{1,0:T(8,128)}', space=vmem, size = 0x8000, scoped, tag = 'scratch operand']
  #allocation3 [shape = 'f32[8,384]{1,0:T(8,128)}', space=vmem, size = 0x3000, scoped, tag = 'scratch operand']
  #allocation4 [shape = 'f32[72,128]{1,0:T(8,128)}', space=vmem, size = 0x9000, scoped, tag = 'scratch operand']
  %s0 = inlined_call_operand.vmem [shape: f32[2,16,139], index: 0, kind: input, shape index: {}]
  %s1 = inlined_call_operand.vmem [shape: f32[8,64], index: 1, kind: input, shape index: {}]
  %s2 = inlined_call_operand.vmem [shape: f32[16,72], index: 2, kind: input, shape index: {}]
  %s3 = inlined_call_operand.vmem [shape: f32[16,1], index: 3, kind: input, shape index: {}]
  %s4 = inlined_call_operand.vmem [shape: f32[1,128], index: 4, kind: input, shape index: {}]
  %s5 = inlined_call_operand.vmem [shape: f32[2,16,128], index: 5, kind: output, shape index: {}]
  %s6 = sld [smem:[#allocation0]]
  $region53: #{uskipblock_center_forward.1} parent=0
    _
  %s8 = ssub.s32 1, %s6
  %s9 = scalar_select 0, %s8, %s6
  loop: start=0, step=1, limit=4
  $region2: #{uskipblock_center_forward.1} parent=0 // loop_pre_header
    _
  $region3: #{uskipblock_center_forward.1} parent=0 // loop_header
    %s11 = sphi 0, %s15
    %p12 = scmp.ge.s32.totalorder %s11, 4
    %s21 = sphi 0, %s23
    %s24 = sphi 0, %s21
    %s25 = sphi 0, %s24
    %s41 = sphi 0, %s25
    %s45 = sphi 0, %s45
    %s47 = sphi 0, %s45
    %s48 = sphi 0, %s47
    %s62 = sphi 0, %s48
    %s66 = sphi 0, %s66
    %s68 = sphi 0, %s66
    %s69 = sphi 0, %s68
    %s83 = sphi 0, %s69
    %s87 = sphi 0, %s87
    %s89 = sphi 0, %s87
    %s90 = sphi 0, %s89
    %s104 = sphi 0, %s90
    %s108 = sphi 0, %s108
    %s110 = sphi 0, %s108
    %s111 = sphi 0, %s110
    %s125 = sphi 0, %s111
    %s131 = sphi 0, %s133
    %s134 = sphi 0, %s131
    %s135 = sphi 0, %s134
    %s151 = sphi 0, %s135
  $region4: #{uskipblock_center_forward.1} parent=0 // loop_header_branch
    %14 = sbr.rel (%p12) target = $region8
  $region5: #{uskipblock_center_forward.1} parent=0 // loop_body
    %s16 = ssub.s32 %s11, 1
    %s17 = ssub.s32 %s11, 2
    %s18 = sadd.s32 %s11, 1
    %s19 = ssub.s32 %s11, %s18
    %p20 = scmp.eq.s32.totalorder %s19, 0
    %s22 = sadd.s32 %s21, 1
    %s23 = scalar_select %p20, %s21, %s22
    %p26 = pneg %p20
    %p27 = scmp.eq.s32.totalorder %s11, 1
    %p28 = por %p26, %p27
    %p29 = scmp.ne.s32.totalorder %s21, %s24
    %p30 = scmp.eq.s32.totalorder %s11, 0
    %p31 = por %p29, %p30
    %p32 = scmp.ne.s32.totalorder %s21, %s24
    %p33 = scmp.eq.s32.totalorder %s16, 1
    %p34 = por %p32, %p33
    %p35 = scmp.ne.s32.totalorder %s24, %s25
    %p36 = scmp.eq.s32.totalorder %s16, 0
    %p37 = por %p35, %p36
    %p38 = scmp.ne.s32.totalorder %s24, %s25
    %p39 = scmp.eq.s32.totalorder %s17, 1
    %p40 = por %p38, %p39
    %p42 = scmp.ne.s32.totalorder %s25, %s41
    %p43 = scmp.eq.s32.totalorder %s17, 0
    %p44 = por %p42, %p43
    %s46 = sadd.s32 %s45, 1
    %p49 = scmp.eq.s32.totalorder %s11, 1
    %p50 = scmp.ne.s32.totalorder %s45, %s47
    %p51 = scmp.eq.s32.totalorder %s11, 0
    %p52 = por %p50, %p51
    %p53 = scmp.ne.s32.totalorder %s45, %s47
    %p54 = scmp.eq.s32.totalorder %s16, 1
    %p55 = por %p53, %p54
    %p56 = scmp.ne.s32.totalorder %s47, %s48
    %p57 = scmp.eq.s32.totalorder %s16, 0
    %p58 = por %p56, %p57
    %p59 = scmp.ne.s32.totalorder %s47, %s48
    %p60 = scmp.eq.s32.totalorder %s17, 1
    %p61 = por %p59, %p60
    %p63 = scmp.ne.s32.totalorder %s48, %s62
    %p64 = scmp.eq.s32.totalorder %s17, 0
    %p65 = por %p63, %p64
    %s67 = sadd.s32 %s66, 1
    %p70 = scmp.eq.s32.totalorder %s11, 1
    %p71 = scmp.ne.s32.totalorder %s66, %s68
    %p72 = scmp.eq.s32.totalorder %s11, 0
    %p73 = por %p71, %p72
    %p74 = scmp.ne.s32.totalorder %s66, %s68
    %p75 = scmp.eq.s32.totalorder %s16, 1
    %p76 = por %p74, %p75
    %p77 = scmp.ne.s32.totalorder %s68, %s69
    %p78 = scmp.eq.s32.totalorder %s16, 0
    %p79 = por %p77, %p78
    %p80 = scmp.ne.s32.totalorder %s68, %s69
    %p81 = scmp.eq.s32.totalorder %s17, 1
    %p82 = por %p80, %p81
    %p84 = scmp.ne.s32.totalorder %s69, %s83
    %p85 = scmp.eq.s32.totalorder %s17, 0
    %p86 = por %p84, %p85
    %s88 = sadd.s32 %s87, 1
    %p91 = scmp.eq.s32.totalorder %s11, 1
    %p92 = scmp.ne.s32.totalorder %s87, %s89
    %p93 = scmp.eq.s32.totalorder %s11, 0
    %p94 = por %p92, %p93
    %p95 = scmp.ne.s32.totalorder %s87, %s89
    %p96 = scmp.eq.s32.totalorder %s16, 1
    %p97 = por %p95, %p96
    %p98 = scmp.ne.s32.totalorder %s89, %s90
    %p99 = scmp.eq.s32.totalorder %s16, 0
    %p100 = por %p98, %p99
    %p101 = scmp.ne.s32.totalorder %s89, %s90
    %p102 = scmp.eq.s32.totalorder %s17, 1
    %p103 = por %p101, %p102
    %p105 = scmp.ne.s32.totalorder %s90, %s104
    %p106 = scmp.eq.s32.totalorder %s17, 0
    %p107 = por %p105, %p106
    %s109 = sadd.s32 %s108, 1
    %p112 = scmp.eq.s32.totalorder %s11, 1
    %p113 = scmp.ne.s32.totalorder %s108, %s110
    %p114 = scmp.eq.s32.totalorder %s11, 0
    %p115 = por %p113, %p114
    %p116 = scmp.ne.s32.totalorder %s108, %s110
    %p117 = scmp.eq.s32.totalorder %s16, 1
    %p118 = por %p116, %p117
    %p119 = scmp.ne.s32.totalorder %s110, %s111
    %p120 = scmp.eq.s32.totalorder %s16, 0
    %p121 = por %p119, %p120
    %p122 = scmp.ne.s32.totalorder %s110, %s111
    %p123 = scmp.eq.s32.totalorder %s17, 1
    %p124 = por %p122, %p123
    %p126 = scmp.ne.s32.totalorder %s111, %s125
    %p127 = scmp.eq.s32.totalorder %s17, 0
    %p128 = por %p126, %p127
    %s129 = ssub.s32 %s11, %s18
    %p130 = scmp.eq.s32.totalorder %s129, 0
    %s132 = sadd.s32 %s131, 1
    %s133 = scalar_select %p130, %s131, %s132
    %p136 = pneg %p130
    %p137 = scmp.eq.s32.totalorder %s11, 1
    %p138 = por %p136, %p137
    %p139 = scmp.ne.s32.totalorder %s131, %s134
    %p140 = scmp.eq.s32.totalorder %s11, 0
    %p141 = por %p139, %p140
    %p142 = scmp.ne.s32.totalorder %s131, %s134
    %p143 = scmp.eq.s32.totalorder %s16, 1
    %p144 = por %p142, %p143
    %p145 = scmp.ne.s32.totalorder %s134, %s135
    %p146 = scmp.eq.s32.totalorder %s16, 0
    %p147 = por %p145, %p146
    %p148 = scmp.ne.s32.totalorder %s134, %s135
    %p149 = scmp.eq.s32.totalorder %s17, 1
    %p150 = por %p148, %p149
    %p152 = scmp.ne.s32.totalorder %s135, %s151
    %p153 = scmp.eq.s32.totalorder %s17, 0
    %p154 = por %p152, %p153
    %p155 = scmp.le.s32.totalorder 1, %s11
    %p156 = scmp.lt.s32.totalorder %s11, 3
    %p157 = pnand %p155, %p156
    %p158 = pneg %p157
    // Predicated region
    $region9: #{uskipblock_center_forward.1} parent=5 // pred_check
      _
    $region10: #{uskipblock_center_forward.1} parent=5 // pred_check_branch
      %160 = sbr.rel (%p157) target = $region12
    $region11: #{uskipblock_center_forward.1} parent=5 // pred_region
      %s161 = ssub.s32 %s11, 1
      // Predicated region
      $region13: #{uskipblock_center_forward.1} parent=11 // pred_check
        %p162 = pneg %p58
      $region14: #{uskipblock_center_forward.1} parent=11 // pred_check_branch
        %164 = sbr.rel (%p162) target = $region16
      $region15: #{uskipblock_center_forward.1} parent=11 // pred_region
        _
      $region16: #{uskipblock_center_forward.1} parent=11 // pred_fallthru
        _
      // Predicated region
      $region17: #{uskipblock_center_forward.1} parent=11 // pred_check
        %p165 = pneg %p79
      $region18: #{uskipblock_center_forward.1} parent=11 // pred_check_branch
        %167 = sbr.rel (%p165) target = $region20
      $region19: #{uskipblock_center_forward.1} parent=11 // pred_region
        _
      $region20: #{uskipblock_center_forward.1} parent=11 // pred_fallthru
        _
      // Predicated region
      $region21: #{uskipblock_center_forward.1} parent=11 // pred_check
        %p168 = pneg %p100
      $region22: #{uskipblock_center_forward.1} parent=11 // pred_check_branch
        %170 = sbr.rel (%p168) target = $region24
      $region23: #{uskipblock_center_forward.1} parent=11 // pred_region
        _
      $region24: #{uskipblock_center_forward.1} parent=11 // pred_fallthru
        _
      // Predicated region
      $region25: #{uskipblock_center_forward.1} parent=11 // pred_check
        %p171 = pneg %p121
      $region26: #{uskipblock_center_forward.1} parent=11 // pred_check_branch
        %173 = sbr.rel (%p171) target = $region28
      $region27: #{uskipblock_center_forward.1} parent=11 // pred_region
        _
      $region28: #{uskipblock_center_forward.1} parent=11 // pred_fallthru
        _
    $region12: #{uskipblock_center_forward.1} parent=5 // pred_fallthru
      _
    %p174 = scmp.lt.s32.totalorder %s11, 2
    // Predicated region
    $region29: #{uskipblock_center_forward.1} parent=5 // pred_check
      %p175 = pneg %p174
    $region30: #{uskipblock_center_forward.1} parent=5 // pred_check_branch
      %177 = sbr.rel (%p175) target = $region32
    $region31: #{uskipblock_center_forward.1} parent=5 // pred_region
      // Predicated region
      $region33: #{uskipblock_center_forward.1} parent=31 // pred_check
        %p178 = pneg %p31
      $region34: #{uskipblock_center_forward.1} parent=31 // pred_check_branch
        %180 = sbr.rel (%p178) target = $region36
      $region35: #{uskipblock_center_forward.1} parent=31 // pred_region
        %p181 = scmp.lt.s32.totalorder %s11, 1
        %s182 = scalar_select %p181, %s11, 1
        %s183 = smul.addr %s182, 4
        %s184 = smul.addr %s183, 8
        %s185 = scalar_lea.vmem %s0, %s184
      $region36: #{uskipblock_center_forward.1} parent=31 // pred_fallthru
        _
    $region32: #{uskipblock_center_forward.1} parent=5 // pred_fallthru
      _
    %p186 = scmp.le.s32.totalorder 1, %s11
    %p187 = scmp.lt.s32.totalorder %s11, 3
    %p188 = pnand %p186, %p187
    %p189 = pneg %p188
    // Predicated region
    $region37: #{uskipblock_center_forward.1} parent=5 // pred_check
      _
    $region38: #{uskipblock_center_forward.1} parent=5 // pred_check_branch
      %191 = sbr.rel (%p188) target = $region40
    $region39: #{uskipblock_center_forward.1} parent=5 // pred_region
      %s192 = ssub.s32 %s11, 1
      %p193 = scmp.lt.s32.totalorder %s16, 1
      %s194 = scalar_select %p193, %s16, 1
      %s195 = smul.addr %s194, 4
      %s196 = smul.addr %s195, 8
      %s197 = scalar_lea.vmem %s0, %s196
      %p198 = pneg %p37
      %p199 = pneg %p34
      %p200 = pneg %p58
      %p201 = pneg %p55
      %p202 = pneg %p79
      %p203 = pneg %p76
      %p204 = pneg %p100
      %p205 = pneg %p97
      %p206 = pneg %p121
      %p207 = pneg %p118
      %p208 = pneg %p147
      %p209 = pneg %p144
      %p210 = scmp.lt.s32.totalorder %s16, 1
      %s211 = scalar_select %p210, %s16, 1
      %s212 = smul.addr %s211, 2
      %s213 = smul.addr %s212, 8
      %s214 = scalar_lea.vmem %s5, %s213
      %p215 = scmp.lt.s32.totalorder %s16, 1
      %s216 = scalar_select %p215, %s16, 1
      %s217 = smul.addr %s216, 4
      %s218 = smul.addr %s217, 8
      %s219 = scalar_lea.vmem %s0, %s218
      %p220 = scmp.lt.s32.totalorder %s16, 1
      %s221 = scalar_select %p220, %s16, 1
      %s222 = smul.addr %s221, 2
      %s223 = smul.addr %s222, 8
      %s224 = scalar_lea.vmem %s5, %s223
      %v225 = vld [vmem:[%s219] sm:$0xff]
      %v226 = vld [vmem:[%s219 + $0x8] sm:$0xff]
      %v227 = vld [vmem:[%s219 + $0x10] sm:$0xff]
      %v228 = vld [vmem:[%s219 + $0x18] sm:$0xff]
      %vm229 = vcmp.ge.f32.partialorder %v225, 0.0
      %vm230 = vcmp.ge.f32.partialorder %v226, 0.0
      %vm231 = vcmp.ge.f32.partialorder %v227, 0.0
      %vm232 = vcmp.ge.f32.partialorder %v228, 0.0
      %v233 = vmul.f32 %v225, 0.2
      %v234 = vmul.f32 %v226, 0.2
      %v235 = vmul.f32 %v227, 0.2
      %v236 = vmul.f32 %v228, 0.2
      %v237 = vsel %vm229, %v225, %v233
      %v238 = vsel %vm230, %v226, %v234
      %v239 = vsel %vm231, %v227, %v235
      %v240 = vsel %vm232, %v228, %v236
      %241 = vst [vmem:[#allocation2] sm:$0xff] %v237
      %242 = vst [vmem:[#allocation2 + $0x8] sm:$0xff] %v239
      %247 = vrot.lane.b32.xlu0 %v237, 127
      %v248 = vpop.permute.xlu0 %247
      %249 = vrot.lane.b32.xlu0 %v238, 127
      %v250 = vpop.permute.xlu0 %249
      %251 = vrot.lane.b32.xlu0 %v239, 127
      %v252 = vpop.permute.xlu0 %251
      %253 = vrot.lane.b32.xlu0 %v240, 127
      %v254 = vpop.permute.xlu0 %253
      %vm255 = vcmask 1039360
      %v256 = vsel %vm255, %v248, %v250
      %v257 = vsel %vm255, %v252, %v254
      %260 = vst [vmem:[#allocation2 + $0x10] sm:$0xff] %v256
      %261 = vst [vmem:[#allocation2 + $0x18] sm:$0xff] %v257
      %262 = vrot.lane.b32.xlu0 %v237, 118
      %v263 = vpop.permute.xlu0 %262
      %264 = vrot.lane.b32.xlu0 %v238, 118
      %v265 = vpop.permute.xlu0 %264
      %266 = vrot.lane.b32.xlu0 %v239, 118
      %v267 = vpop.permute.xlu0 %266
      %268 = vrot.lane.b32.xlu0 %v240, 118
      %v269 = vpop.permute.xlu0 %268
      %vm270 = vcmask 965632
      %v271 = vsel %vm270, %v263, %v265
      %v272 = vsel %vm270, %v267, %v269
      %275 = vst [vmem:[#allocation2 + $0x20] sm:$0xff] %v271
      %276 = vst [vmem:[#allocation2 + $0x28] sm:$0xff] %v272
      %277 = vrot.lane.b32.xlu0 %v237, 117
      %v278 = vpop.permute.xlu0 %277
      %279 = vrot.lane.b32.xlu0 %v238, 117
      %v280 = vpop.permute.xlu0 %279
      %281 = vrot.lane.b32.xlu0 %v239, 117
      %v282 = vpop.permute.xlu0 %281
      %283 = vrot.lane.b32.xlu0 %v240, 117
      %v284 = vpop.permute.xlu0 %283
      %vm285 = vcmask 957440
      %v286 = vsel %vm285, %v278, %v280
      %v287 = vsel %vm285, %v282, %v284
      %290 = vst [vmem:[#allocation2 + $0x30] sm:$0xff] %v286
      %291 = vst [vmem:[#allocation2 + $0x38] sm:$0xff] %v287
      %v292 = vld [vmem:[%s1] sm:$0xff]
      %v293 = vld [vmem:[#allocation2] sm:$0xff]
      %v294 = vld [vmem:[#allocation2 + $0x8] sm:$0xff]
      %v295 = vld [vmem:[#allocation2 + $0x10] sm:$0xff]
      %v296 = vld [vmem:[#allocation2 + $0x18] sm:$0xff]
      %v297 = vld [vmem:[#allocation2 + $0x20] sm:$0xff]
      %v298 = vld [vmem:[#allocation2 + $0x28] sm:$0xff]
      %v299 = vld [vmem:[#allocation2 + $0x30] sm:$0xff]
      %v300 = vld [vmem:[#allocation2 + $0x38] sm:$0xff]
      %vm301 = vcmask 523264
      %v303 = vsel %vm301, %v292, 0
      %305 = vmatprep.subr.mxu0 0.0
      %306 = vmatpush1.msra.mxu0 %v293
      %307 = vmatprep.subr.mxu0 0.0
      %308 = vmatpush1.msra.mxu0 %v294
      %309 = vmatprep.subr.mxu0 0.0
      %310 = vmatpush1.msra.mxu0 %v295
      %311 = vmatprep.subr.mxu0 0.0
      %312 = vmatpush1.msra.mxu0 %v296
      %313 = vmatprep.subr.mxu0 0.0
      %314 = vmatpush1.msra.mxu0 %v297
      %315 = vmatprep.subr.mxu0 0.0
      %316 = vmatpush1.msra.mxu0 %v298
      %317 = vmatprep.subr.mxu0 0.0
      %318 = vmatpush1.msra.mxu0 %v299
      %319 = vmatprep.subr.mxu0 0.0
      %320 = vmatpush1.msra.mxu0 %v300
      %321 = vmatprep.subr.mxu0 0.0
      %322 = vmatpush1.msra.mxu0 0.0
      %323 = vmatprep.subr.mxu0 0.0
      %324 = vmatpush1.msra.mxu0 0.0
      %325 = vmatprep.subr.mxu0 0.0
      %326 = vmatpush1.msra.mxu0 0.0
      %327 = vmatprep.subr.mxu0 0.0
      %328 = vmatpush1.msra.mxu0 0.0
      %329 = vmatprep.subr.mxu0 0.0
      %330 = vmatpush1.msra.mxu0 0.0
      %331 = vmatprep.subr.mxu0 0.0
      %332 = vmatpush1.msra.mxu0 0.0
      %333 = vmatprep.subr.mxu0 0.0
      %334 = vmatpush1.msra.mxu0 0.0
      %335 = vmatprep.subr.mxu0 0.0
      %336 = vmatpush1.msra.mxu0 0.0
      %337 = vmatprep.subr.mxu0 0.0
      %338 = vmatpush1.msra.mxu0 0.0
      %339 = vmatprep.subr.mxu0 0.0
      %340 = vmatpush1.msra.mxu0 0.0
      %341 = vmatprep.subr.mxu0 0.0
      %342 = vmatpush1.msra.mxu0 0.0
      %343 = vmatprep.subr.mxu0 0.0
      %344 = vmatpush1.msra.mxu0 0.0
      %345 = vmatprep.subr.mxu0 0.0
      %346 = vmatpush1.msra.mxu0 0.0
      %347 = vmatprep.subr.mxu0 0.0
      %348 = vmatpush1.msra.mxu0 0.0
      %349 = vmatprep.subr.mxu0 0.0
      %350 = vmatpush1.msra.mxu0 0.0
      %351 = vmatprep.subr.mxu0 0.0
      %352 = vmatpush1.msra.mxu0 0.0
      %353 = vmatprep.subr.mxu0 0.0
      %354 = vmatpush1.msra.mxu0 0.0
      %355 = vmatprep.subr.mxu0 0.0
      %356 = vmatpush1.msra.mxu0 0.0
      %357 = vmatprep.subr.mxu0 0.0
      %358 = vmatpush1.msra.mxu0 0.0
      %359 = vmatprep.subr.mxu0 0.0
      %360 = vmatpush1.msra.mxu0 0.0
      %361 = vmatprep.subr.mxu0 0.0
      %362 = vmatpush1.msra.mxu0 0.0
      %363 = vmatprep.subr.mxu0 0.0
      %364 = vmatpush1.msra.mxu0 0.0
      %365 = vmatprep.subr.mxu0 0.0
      %366 = vmatpush1.msra.mxu0 0.0
      %367 = vmatprep.subr.mxu0 0.0
      %368 = vmatpush1.msra.mxu0 0.0
      %369 = vmatprep.mubr.f32.mxu0 0.0
      %370 = vmatmul.mubr.f32.gmra.mrb[0].mxu0 %v303
      %v371 = vpop.f32.mrb[0].mxu0
      %v372 = vadd.f32 0.0, %v371
      %v373 = vpop.f32.mrb[0].mxu0
      %374 = vdwg.mxu0
      %v375 = vmax.f32 %v372, 0.0
      %v376 = vld [vmem:[%s4] sm:$0x1]
      %v378 = vlaneseq
      %v379 = vshrl.u32 %v378, 7
      %v380 = vsub.s32 0, %v379
      %v381 = vrot.slane %v376, %v380
      %v383 = vmul.f32 %v375, %v381
      %384 = vst [vmem:[#allocation3] sm:$0xff] 0.0
      %385 = vst [vmem:[#allocation3 + $0x10] sm:$0xff] 0.0
      %386 = vst [vmem:[#allocation3 + $0x8] sm:$0xff] %v383
      %v387 = vld [vmem:[#allocation3] sm:$0xff]
      %v388 = vld [vmem:[#allocation3 + $0x8] sm:$0xff]
      %391 = vrot.lane.b32.xlu0 %v387, 11
      %v392 = vpop.permute.xlu0 %391
      %393 = vrot.lane.b32.xlu0 %v388, 11
      %v394 = vpop.permute.xlu0 %393
      %vm395 = vcmask 89088
      %v396 = vsel %vm395, %v392, %v394
      %398 = vst [vmem:[#allocation4] sm:$0xff] %v396
      %v399 = vld [vmem:[#allocation3] sm:$0xff]
      %v400 = vld [vmem:[#allocation3 + $0x8] sm:$0xff]
      %403 = vrot.lane.b32.xlu0 %v399, 10
      %v404 = vpop.permute.xlu0 %403
      %405 = vrot.lane.b32.xlu0 %v400, 10
      %v406 = vpop.permute.xlu0 %405
      %vm407 = vcmask 80896
      %v408 = vsel %vm407, %v404, %v406
      %410 = vst [vmem:[#allocation4 + $0x8] sm:$0xff] %v408
      %v411 = vld [vmem:[#allocation3] sm:$0xff]
      %v412 = vld [vmem:[#allocation3 + $0x8] sm:$0xff]
      %415 = vrot.lane.b32.xlu0 %v411, 9
      %v416 = vpop.permute.xlu0 %415
      %417 = vrot.lane.b32.xlu0 %v412, 9
      %v418 = vpop.permute.xlu0 %417
      %vm419 = vcmask 72704
      %v420 = vsel %vm419, %v416, %v418
      %422 = vst [vmem:[#allocation4 + $0x10] sm:$0xff] %v420
      %v423 = vld [vmem:[#allocation3] sm:$0xff]
      %v424 = vld [vmem:[#allocation3 + $0x8] sm:$0xff]
      %427 = vrot.lane.b32.xlu0 %v423, 1
      %v428 = vpop.permute.xlu0 %427
      %429 = vrot.lane.b32.xlu0 %v424, 1
      %v430 = vpop.permute.xlu0 %429
      %vm431 = vcmask 7168
      %v432 = vsel %vm431, %v428, %v430
      %434 = vst [vmem:[#allocation4 + $0x18] sm:$0xff] %v432
      %v435 = vld [vmem:[#allocation3 + $0x8] sm:$0xff]
      %436 = vst [vmem:[#allocation4 + $0x20] sm:$0xff] %v435
      %v437 = vld [vmem:[#allocation3 + $0x8] sm:$0xff]
      %v438 = vld [vmem:[#allocation3 + $0x10] sm:$0xff]
      %441 = vrot.lane.b32.xlu0 %v437, 127
      %v442 = vpop.permute.xlu0 %441
      %443 = vrot.lane.b32.xlu0 %v438, 127
      %v444 = vpop.permute.xlu0 %443
      %v445 = vsel %vm255, %v442, %v444
      %447 = vst [vmem:[#allocation4 + $0x28] sm:$0xff] %v445
      %v448 = vld [vmem:[#allocation3 + $0x8] sm:$0xff]
      %v449 = vld [vmem:[#allocation3 + $0x10] sm:$0xff]
      %452 = vrot.lane.b32.xlu0 %v448, 119
      %v453 = vpop.permute.xlu0 %452
      %454 = vrot.lane.b32.xlu0 %v449, 119
      %v455 = vpop.permute.xlu0 %454
      %vm456 = vcmask 973824
      %v457 = vsel %vm456, %v453, %v455
      %459 = vst [vmem:[#allocation4 + $0x30] sm:$0xff] %v457
      %v460 = vld [vmem:[#allocation3 + $0x8] sm:$0xff]
      %v461 = vld [vmem:[#allocation3 + $0x10] sm:$0xff]
      %464 = vrot.lane.b32.xlu0 %v460, 118
      %v465 = vpop.permute.xlu0 %464
      %466 = vrot.lane.b32.xlu0 %v461, 118
      %v467 = vpop.permute.xlu0 %466
      %v468 = vsel %vm270, %v465, %v467
      %470 = vst [vmem:[#allocation4 + $0x38] sm:$0xff] %v468
      %v471 = vld [vmem:[#allocation3 + $0x8] sm:$0xff]
      %v472 = vld [vmem:[#allocation3 + $0x10] sm:$0xff]
      %475 = vrot.lane.b32.xlu0 %v471, 117
      %v476 = vpop.permute.xlu0 %475
      %477 = vrot.lane.b32.xlu0 %v472, 117
      %v478 = vpop.permute.xlu0 %477
      %v479 = vsel %vm285, %v476, %v478
      %481 = vst [vmem:[#allocation4 + $0x40] sm:$0xff] %v479
      %v482 = vld [vmem:[%s2] sm:$0xff]
      %v483 = vld [vmem:[%s2 + $0x8] sm:$0xff]
      %v484 = vld [vmem:[#allocation4] sm:$0xff]
      %v485 = vld [vmem:[#allocation4 + $0x8] sm:$0xff]
      %v486 = vld [vmem:[#allocation4 + $0x10] sm:$0xff]
      %v487 = vld [vmem:[#allocation4 + $0x18] sm:$0xff]
      %v488 = vld [vmem:[#allocation4 + $0x20] sm:$0xff]
      %v489 = vld [vmem:[#allocation4 + $0x28] sm:$0xff]
      %v490 = vld [vmem:[#allocation4 + $0x30] sm:$0xff]
      %v491 = vld [vmem:[#allocation4 + $0x38] sm:$0xff]
      %v492 = vld [vmem:[#allocation4 + $0x40] sm:$0xff]
      %v493 = vld [vmem:[%s3] sm:$0xff]
      %v494 = vld [vmem:[%s3 + $0x8] sm:$0xff]
      %496 = vset.pattern.permute.xlu0 0
      %497 = vperm.xlu0 %496, %v493
      %v498 = vpop.permute.xlu0 %497
      %501 = vset.pattern.permute.xlu0 0
      %502 = vperm.xlu0 %501, %v494
      %v503 = vpop.permute.xlu0 %502
      %vm505 = vcmask 588800
      %v507 = vsel %vm505, %v482, 0
      %v510 = vsel %vm505, %v483, 0
      %512 = vmatprep.subr.mxu0 0.0
      %513 = vmatpush1.msra.mxu0 %v484
      %514 = vmatprep.subr.mxu0 0.0
      %515 = vmatpush1.msra.mxu0 %v485
      %516 = vmatprep.subr.mxu0 0.0
      %517 = vmatpush1.msra.mxu0 %v486
      %518 = vmatprep.subr.mxu0 0.0
      %519 = vmatpush1.msra.mxu0 %v487
      %520 = vmatprep.subr.mxu0 0.0
      %521 = vmatpush1.msra.mxu0 %v488
      %522 = vmatprep.subr.mxu0 0.0
      %523 = vmatpush1.msra.mxu0 %v489
      %524 = vmatprep.subr.mxu0 0.0
      %525 = vmatpush1.msra.mxu0 %v490
      %526 = vmatprep.subr.mxu0 0.0
      %527 = vmatpush1.msra.mxu0 %v491
      %528 = vmatprep.subr.mxu0 0.0
      %529 = vmatpush1.msra.mxu0 %v492
      %530 = vmatprep.subr.mxu0 0.0
      %531 = vmatpush1.msra.mxu0 0.0
      %532 = vmatprep.subr.mxu0 0.0
      %533 = vmatpush1.msra.mxu0 0.0
      %534 = vmatprep.subr.mxu0 0.0
      %535 = vmatpush1.msra.mxu0 0.0
      %536 = vmatprep.subr.mxu0 0.0
      %537 = vmatpush1.msra.mxu0 0.0
      %538 = vmatprep.subr.mxu0 0.0
      %539 = vmatpush1.msra.mxu0 0.0
      %540 = vmatprep.subr.mxu0 0.0
      %541 = vmatpush1.msra.mxu0 0.0
      %542 = vmatprep.subr.mxu0 0.0
      %543 = vmatpush1.msra.mxu0 0.0
      %544 = vmatprep.subr.mxu0 0.0
      %545 = vmatpush1.msra.mxu0 0.0
      %546 = vmatprep.subr.mxu0 0.0
      %547 = vmatpush1.msra.mxu0 0.0
      %548 = vmatprep.subr.mxu0 0.0
      %549 = vmatpush1.msra.mxu0 0.0
      %550 = vmatprep.subr.mxu0 0.0
      %551 = vmatpush1.msra.mxu0 0.0
      %552 = vmatprep.subr.mxu0 0.0
      %553 = vmatpush1.msra.mxu0 0.0
      %554 = vmatprep.subr.mxu0 0.0
      %555 = vmatpush1.msra.mxu0 0.0
      %556 = vmatprep.subr.mxu0 0.0
      %557 = vmatpush1.msra.mxu0 0.0
      %558 = vmatprep.subr.mxu0 0.0
      %559 = vmatpush1.msra.mxu0 0.0
      %560 = vmatprep.subr.mxu0 0.0
      %561 = vmatpush1.msra.mxu0 0.0
      %562 = vmatprep.subr.mxu0 0.0
      %563 = vmatpush1.msra.mxu0 0.0
      %564 = vmatprep.subr.mxu0 0.0
      %565 = vmatpush1.msra.mxu0 0.0
      %566 = vmatprep.subr.mxu0 0.0
      %567 = vmatpush1.msra.mxu0 0.0
      %568 = vmatprep.subr.mxu0 0.0
      %569 = vmatpush1.msra.mxu0 0.0
      %570 = vmatprep.subr.mxu0 0.0
      %571 = vmatpush1.msra.mxu0 0.0
      %572 = vmatprep.subr.mxu0 0.0
      %573 = vmatpush1.msra.mxu0 0.0
      %574 = vmatprep.subr.mxu0 0.0
      %575 = vmatpush1.msra.mxu0 0.0
      %576 = vmatprep.mubr.f32.mxu0 0.0
      %577 = vmatmul.mubr.f32.gmra.mrb[0].mxu0 %v507
      %v578 = vpop.f32.mrb[0].mxu0
      %v579 = vadd.f32 %v498, %v578
      %v580 = vpop.f32.mrb[0].mxu0
      %581 = vmatprep.mubr.f32.mxu0 0.0
      %582 = vmatmul.mubr.f32.gmra.mrb[0].mxu0 %v510
      %v583 = vpop.f32.mrb[0].mxu0
      %v584 = vadd.f32 %v503, %v583
      %v585 = vpop.f32.mrb[0].mxu0
      %586 = vdwg.mxu0
      %587 = vst [vmem:[%s224] sm:$0xff] %v579
      %588 = vst [vmem:[%s224 + $0x8] sm:$0xff] %v584
      %p589 = scmp.lt.s32.totalorder %s16, 1
      %s590 = scalar_select %p589, %s16, 1
      %s591 = smul.addr %s590, 2
      %s592 = smul.addr %s591, 8
      %s593 = scalar_lea.vmem %s5, %s592
      // Predicated region
      $region41: #{uskipblock_center_forward.1} parent=39 // pred_check
        %p594 = pneg %p144
      $region42: #{uskipblock_center_forward.1} parent=39 // pred_check_branch
        %596 = sbr.rel (%p594) target = $region44
      $region43: #{uskipblock_center_forward.1} parent=39 // pred_region
        _
      $region44: #{uskipblock_center_forward.1} parent=39 // pred_fallthru
        _
    $region40: #{uskipblock_center_forward.1} parent=5 // pred_fallthru
      _
    %p597 = scmp.le.s32.totalorder 2, %s11
    // Predicated region
    $region45: #{uskipblock_center_forward.1} parent=5 // pred_check
      %p598 = pneg %p597
    $region46: #{uskipblock_center_forward.1} parent=5 // pred_check_branch
      %600 = sbr.rel (%p598) target = $region48
    $region47: #{uskipblock_center_forward.1} parent=5 // pred_region
      %s601 = ssub.s32 %s11, 2
      // Predicated region
      $region49: #{uskipblock_center_forward.1} parent=47 // pred_check
        %p602 = pneg %p150
      $region50: #{uskipblock_center_forward.1} parent=47 // pred_check_branch
        %604 = sbr.rel (%p602) target = $region52
      $region51: #{uskipblock_center_forward.1} parent=47 // pred_region
        %p605 = scmp.lt.s32.totalorder %s17, 1
        %s606 = scalar_select %p605, %s17, 1
        %s607 = smul.addr %s606, 2
        %s608 = smul.addr %s607, 8
        %s609 = scalar_lea.vmem %s5, %s608
      $region52: #{uskipblock_center_forward.1} parent=47 // pred_fallthru
        _
    $region48: #{uskipblock_center_forward.1} parent=5 // pred_fallthru
      _
  $region6: #{uskipblock_center_forward.1} parent=0 // loop_footer
    %s15 = sadd.s32 1, %s11
  $region7: #{uskipblock_center_forward.1} parent=0 // loop_footer_branch
    %10 = sbr.rel target = $region3
  $region8: #{uskipblock_center_forward.1} parent=0 // loop_exit
    _

</llo_original>
